<compile_context>
chip_gen: v7x
topology: tpu7x:2x2x1
jax: 0.10.0
libtpu: 0.0.40
codegen_flags: <defaults>
</compile_context>

<pallas_src>
import functools

import jax
import jax.numpy as jnp
from jax import lax
from jax.experimental import pallas as pl
from jax.experimental.pallas import tpu as pltpu

_SMOOTH = 1e-6
_LANE = 128
_SUBLANE = 8
_MAX_TILE_ROWS = 2048  # 2048*128*4 B = 1 MiB per f32 input tile


def _dice_partial_kernel(x_ref, t_ref, o_ref, *, total_rows, tile_rows, need_mask):
    # Upcast in-kernel (bf16 inputs stay bf16 in HBM -> half the bytes read).
    x = x_ref[...].astype(jnp.float32)
    t = t_ref[...].astype(jnp.float32)

    if need_mask:
        # Ragged last tile: rows past `total_rows` hold unspecified data.
        i = pl.program_id(0)
        valid = total_rows - i * tile_rows
        row_id = lax.broadcasted_iota(jnp.int32, (tile_rows, _LANE), 0)
        keep = row_id < valid
        x = jnp.where(keep, x, 0.0)
        t = jnp.where(keep, t, 0.0)

    # Sublane fold: (tile_rows, 128) -> (8, 128) using only whole-vreg VPU
    # adds; the final cross-lane reduction happens once, outside the kernel.
    def fold(v):
        return jnp.sum(v.reshape(tile_rows // _SUBLANE, _SUBLANE, _LANE), axis=0)

    o_ref[0, 0] = fold(x * t)  # intersect partial
    o_ref[0, 1] = fold(t * t)  # y_sum partial
    o_ref[0, 2] = fold(x * x)  # z_sum partial


def binary_dice_loss(inputs, target):
    assert inputs.shape == target.shape, "predict & target shape do not match"

    def _prep(a):
        if not jnp.issubdtype(a.dtype, jnp.floating):
            a = a.astype(jnp.float32)  # int/bool targets: cast required anyway
        return a.reshape(-1)  # free reshape, no HBM copy

    x = _prep(inputs)
    t = _prep(target)
    n = x.size

    # Only pad if the element count is not a multiple of 128 (rare for UNet
    # shapes; zero padding does not change any of the three sums).
    rem = n % _LANE
    if rem:
        pad = _LANE - rem
        x = jnp.pad(x, (0, pad))
        t = jnp.pad(t, (0, pad))
    rows = x.size // _LANE
    x2 = x.reshape(rows, _LANE)
    t2 = t.reshape(rows, _LANE)

    rows_up8 = ((rows + _SUBLANE - 1) // _SUBLANE) * _SUBLANE
    tile_rows = min(_MAX_TILE_ROWS, rows_up8)
    grid = -(-rows // tile_rows)
    need_mask = (rows % tile_rows) != 0

    kernel = functools.partial(
        _dice_partial_kernel,
        total_rows=rows,
        tile_rows=tile_rows,
        need_mask=need_mask,
    )

    n_elems = rows * _LANE
    bytes_in = n_elems * (x2.dtype.itemsize + t2.dtype.itemsize)
    bytes_out = grid * 3 * _SUBLANE * _LANE * 4
    cost = pl.CostEstimate(
        flops=6 * n_elems,
        transcendentals=0,
        bytes_accessed=bytes_in + bytes_out,
    )

    partials = pl.pallas_call(
        kernel,
        out_shape=jax.ShapeDtypeStruct((grid, 3, _SUBLANE, _LANE), jnp.float32),
        grid_spec=pltpu.PrefetchScalarGridSpec(
            num_scalar_prefetch=0,
            grid=(grid,),
            in_specs=[
                pl.BlockSpec((tile_rows, _LANE), lambda i: (i, 0)),
                pl.BlockSpec((tile_rows, _LANE), lambda i: (i, 0)),
            ],
            out_specs=pl.BlockSpec(
                (1, 3, _SUBLANE, _LANE), lambda i: (i, 0, 0, 0)
            ),
        ),
        compiler_params=pltpu.CompilerParams(
            dimension_semantics=("parallel",),
        ),
        cost_estimate=cost,
    )(x2, t2)

    # Tiny final combine in plain JAX (grid * 3 * 8 * 128 f32 values).
    sums = jnp.sum(partials, axis=(0, 2, 3))
    intersect, y_sum, z_sum = sums[0], sums[1], sums[2]
    dice = (2.0 * intersect + _SMOOTH) / (z_sum + y_sum + _SMOOTH)
    return 1.0 - dice


def _reference_dice_loss(score, target):
    smooth = 1e-6
    intersect = jnp.sum(score * target)
    y_sum = jnp.sum(target * target)
    z_sum = jnp.sum(score * score)
    return 1.0 - (2.0 * intersect + smooth) / (z_sum + y_sum + smooth)


if __name__ == "__main__":
    key = jax.random.PRNGKey(0)
    k1, k2, k3, k4 = jax.random.split(key, 4)

    # NCHW, matching the PyTorch segmentation layout.
    B, C, H, W = 2, 4, 16, 16
    inputs = jax.nn.sigmoid(jax.random.normal(k1, (B, C, H, W), dtype=jnp.float32))
    target = (jax.random.uniform(k2, (B, C, H, W)) > 0.5).astype(jnp.float32)

    loss = binary_dice_loss(inputs, target)
    jax.block_until_ready(loss)
    ref = _reference_dice_loss(inputs.astype(jnp.float32), target.astype(jnp.float32))
    assert jnp.allclose(loss, ref, atol=1e-5, rtol=1e-5), (loss, ref)

    # Secondary check: ragged row count (exercises the in-kernel mask path).
    shape2 = (2, 2, 10, 16)  # 640 elements -> 5 rows of 128 -> padded 8-row tile
    inputs2 = jax.nn.sigmoid(jax.random.normal(k3, shape2, dtype=jnp.float32))
    target2 = (jax.random.uniform(k4, shape2) > 0.5).astype(jnp.float32)
    loss2 = binary_dice_loss(inputs2, target2)
    jax.block_until_ready(loss2)
    ref2 = _reference_dice_loss(inputs2, target2)
    assert jnp.allclose(loss2, ref2, atol=1e-5, rtol=1e-5), (loss2, ref2)

    print("KERNEL_OK")
</pallas_src>

<mosaic_0001>
module attributes {stable_mosaic.version = 11 : i64} {
  func.func @_dice_partial_kernel(%arg0: i32, %arg1: memref<16x128xf32, #tpu.memory_space<vmem>>, %arg2: memref<16x128xf32, #tpu.memory_space<vmem>>, %arg3: memref<1x3x8x128xf32, #tpu.memory_space<vmem>>) attributes {dimension_semantics = [#tpu.dimension_semantics<parallel>], iteration_bounds = array<i64: 1>, scalar_prefetch = 0 : i64, scratch_operands = 0 : i64, tpu.core_type = #tpu.core_type<tc>, window_params = [{transform_indices = @transform_0, window_bounds = array<i64: 16, 128>}, {transform_indices = @transform_1, window_bounds = array<i64: 16, 128>}, {transform_indices = @transform_2, window_bounds = array<i64: 1, 3, 8, 128>}]} {
    %c0 = arith.constant 0 : index
    %c0_0 = arith.constant 0 : index
    %0 = vector.load %arg1[%c0, %c0_0] : memref<16x128xf32, #tpu.memory_space<vmem>>, vector<16x128xf32>
    %c0_1 = arith.constant 0 : index
    %c0_2 = arith.constant 0 : index
    %1 = vector.load %arg2[%c0_1, %c0_2] : memref<16x128xf32, #tpu.memory_space<vmem>>, vector<16x128xf32>
    %2 = arith.mulf %0, %1 : vector<16x128xf32>
    %3 = vector.shape_cast %2 : vector<16x128xf32> to vector<2x8x128xf32>
    %cst = arith.constant dense<0.000000e+00> : vector<8x128xf32>
    %4 = vector.multi_reduction <add>, %3, %cst [0] : vector<2x8x128xf32> to vector<8x128xf32>
    %c0_3 = arith.constant 0 : index
    %c0_4 = arith.constant 0 : index
    %c0_5 = arith.constant 0 : index
    %c0_6 = arith.constant 0 : index
    %5 = vector.load %arg3[%c0_3, %c0_4, %c0_5, %c0_6] : memref<1x3x8x128xf32, #tpu.memory_space<vmem>>, vector<1x1x8x128xf32>
    %6 = vector.shape_cast %5 : vector<1x1x8x128xf32> to vector<8x128xf32>
    %7 = vector.shape_cast %4 : vector<8x128xf32> to vector<1x1x8x128xf32>
    tpu.vector_store %arg3[%c0_3, %c0_4, %c0_5, %c0_6], %7 {strides = array<i32>} : memref<1x3x8x128xf32, #tpu.memory_space<vmem>>, vector<1x1x8x128xf32>,
    %8 = arith.mulf %1, %1 : vector<16x128xf32>
    %9 = vector.shape_cast %8 : vector<16x128xf32> to vector<2x8x128xf32>
    %cst_7 = arith.constant dense<0.000000e+00> : vector<8x128xf32>
    %10 = vector.multi_reduction <add>, %9, %cst_7 [0] : vector<2x8x128xf32> to vector<8x128xf32>
    %c0_8 = arith.constant 0 : index
    %c1 = arith.constant 1 : index
    %c0_9 = arith.constant 0 : index
    %c0_10 = arith.constant 0 : index
    %11 = vector.load %arg3[%c0_8, %c1, %c0_9, %c0_10] : memref<1x3x8x128xf32, #tpu.memory_space<vmem>>, vector<1x1x8x128xf32>
    %12 = vector.shape_cast %11 : vector<1x1x8x128xf32> to vector<8x128xf32>
    %13 = vector.shape_cast %10 : vector<8x128xf32> to vector<1x1x8x128xf32>
    tpu.vector_store %arg3[%c0_8, %c1, %c0_9, %c0_10], %13 {strides = array<i32>} : memref<1x3x8x128xf32, #tpu.memory_space<vmem>>, vector<1x1x8x128xf32>,
    %14 = arith.mulf %0, %0 : vector<16x128xf32>
    %15 = vector.shape_cast %14 : vector<16x128xf32> to vector<2x8x128xf32>
    %cst_11 = arith.constant dense<0.000000e+00> : vector<8x128xf32>
    %16 = vector.multi_reduction <add>, %15, %cst_11 [0] : vector<2x8x128xf32> to vector<8x128xf32>
    %c0_12 = arith.constant 0 : index
    %c2 = arith.constant 2 : index
    %c0_13 = arith.constant 0 : index
    %c0_14 = arith.constant 0 : index
    %17 = vector.load %arg3[%c0_12, %c2, %c0_13, %c0_14] : memref<1x3x8x128xf32, #tpu.memory_space<vmem>>, vector<1x1x8x128xf32>
    %18 = vector.shape_cast %17 : vector<1x1x8x128xf32> to vector<8x128xf32>
    %19 = vector.shape_cast %16 : vector<8x128xf32> to vector<1x1x8x128xf32>
    tpu.vector_store %arg3[%c0_12, %c2, %c0_13, %c0_14], %19 {strides = array<i32>} : memref<1x3x8x128xf32, #tpu.memory_space<vmem>>, vector<1x1x8x128xf32>,
    return
  }
  func.func @transform_0(%arg0: i32) -> (i32, i32) {
    %c0_i32 = arith.constant 0 : i32
    %c0_i32_0 = arith.constant 0 : i32
    return %arg0, %c0_i32 : i32, i32
  }
  func.func @transform_1(%arg0: i32) -> (i32, i32) {
    %c0_i32 = arith.constant 0 : i32
    %c0_i32_0 = arith.constant 0 : i32
    return %arg0, %c0_i32 : i32, i32
  }
  func.func @transform_2(%arg0: i32) -> (i32, i32, i32, i32) {
    %c0_i32 = arith.constant 0 : i32
    %c0_i32_0 = arith.constant 0 : i32
    %c0_i32_1 = arith.constant 0 : i32
    %c0_i32_2 = arith.constant 0 : i32
    return %arg0, %c0_i32, %c0_i32_0, %c0_i32_1 : i32, i32, i32, i32
  }
}

</mosaic_0001>

<llo_original>
// kernel: tpu_custom_call.1
$region0: #{tpu_custom_call.1}
  #allocation0 [shape = 'u32[]', space=smem, size = 0x4, offset = 0x4, fixed_abs, tag = 'smem constant byte address 0x4 - core index']
  #allocation1 [shape = 'u32[144,128]{1,0:T(1,128)}', space=vmem, size = 0x12000, scoped, tag = 'internal scratch']
  %s0 = inlined_call_operand.hbm [shape: f32[16,128], index: 0, kind: input, shape index: {}]
  %s1 = inlined_call_operand.hbm [shape: f32[16,128], index: 1, kind: input, shape index: {}]
  %s2 = inlined_call_operand.hbm [shape: f32[1,3,8,128], index: 2, kind: output, shape index: {}]
  %s3 = sld [smem:[#allocation0]]
  $region26: #{tpu_custom_call.1} parent=0
    _
  %s5 = ssub.s32 1, %s3
  %s6 = scalar_select 0, %s5, %s3
  $region1: #{tpu_custom_call.1} parent=0
    #allocation2 [shape = 'u8[8192]{0}', space=vmem, size = 0x2000, scoped, tag = 'input window, operand 0, single buffered']
    #allocation3 [shape = 's32[1]{0}', space=sflag, size = 0x4, scoped, tag = 'scoped memory for tpu_custom_call.1']
    #allocation4 [shape = 's32[1]{0}', space=sflag, size = 0x4, scoped, tag = 'scoped memory for tpu_custom_call.1']
    #allocation5 [shape = 'u8[8192]{0}', space=vmem, size = 0x2000, scoped, tag = 'input window, operand 1, single buffered']
    #allocation6 [shape = 's32[1]{0}', space=sflag, size = 0x4, scoped, tag = 'scoped memory for tpu_custom_call.1']
    #allocation7 [shape = 'u8[12288]{0}', space=vmem, size = 0x3000, scoped, tag = 'output window, operand 0, single buffered']
    %7 = vsyncpa [#allocation3], 0
    %8 = vsyncpa [#allocation6], 0
    %9 = vsyncpa [#allocation4], 0
    // Predicated region
    $region2: #{tpu_custom_call.1} parent=1 // pred_check
      _
    $region3: #{tpu_custom_call.1} parent=1 // pred_check_branch
      %11 = sbr.rel (0) target = $region5
    $region4: #{tpu_custom_call.1} parent=1 // pred_region
      %s13 = ssub.s32 256, 256
      %14 = vsyncadd [#allocation3], %s13
      %s15 = sshll.u32 [#allocation2], 4
      %s16 = int_to_ptr.vmem [resolvable:$true] %s15
      %21 = dma.hbm_to_vmem [thread:$0]  %s0, 256, %s16, [#allocation3], 128, 128, 8
    $region5: #{tpu_custom_call.1} parent=1 // pred_fallthru
      _
    // Predicated region
    $region6: #{tpu_custom_call.1} parent=1 // pred_check
      _
    $region7: #{tpu_custom_call.1} parent=1 // pred_check_branch
      %23 = sbr.rel (0) target = $region9
    $region8: #{tpu_custom_call.1} parent=1 // pred_region
      %s25 = ssub.s32 256, 256
      %26 = vsyncadd [#allocation6], %s25
      %s27 = sshll.u32 [#allocation5], 4
      %s28 = int_to_ptr.vmem [resolvable:$true] %s27
      %33 = dma.hbm_to_vmem [thread:$0]  %s1, 256, %s28, [#allocation6], 128, 128, 8
    $region9: #{tpu_custom_call.1} parent=1 // pred_fallthru
      _
    // Predicated region
    $region10: #{tpu_custom_call.1} parent=1 // pred_check
      _
    $region11: #{tpu_custom_call.1} parent=1 // pred_check_branch
      %35 = sbr.rel (0) target = $region13
    $region12: #{tpu_custom_call.1} parent=1 // pred_region
      %36 = dma.done [#allocation3], 256
    $region13: #{tpu_custom_call.1} parent=1 // pred_fallthru
      _
    // Predicated region
    $region14: #{tpu_custom_call.1} parent=1 // pred_check
      _
    $region15: #{tpu_custom_call.1} parent=1 // pred_check_branch
      %38 = sbr.rel (0) target = $region17
    $region16: #{tpu_custom_call.1} parent=1 // pred_region
      %39 = dma.done [#allocation6], 256
    $region17: #{tpu_custom_call.1} parent=1 // pred_fallthru
      _
    %v40 = vld [vmem:[#allocation2] sm:$0xff]
    %v41 = vld [vmem:[#allocation2 + $0x8] sm:$0xff]
    %v42 = vld [vmem:[#allocation5] sm:$0xff]
    %v43 = vld [vmem:[#allocation5 + $0x8] sm:$0xff]
    %v44 = vmul.f32 %v40, %v42
    %v45 = vmul.f32 %v41, %v43
    %v46 = vadd.f32 %v44, %v45
    %47 = vst [vmem:[#allocation7] sm:$0xff] %v46
    %v48 = vmul.f32 %v42, %v42
    %v49 = vmul.f32 %v43, %v43
    %v50 = vadd.f32 %v48, %v49
    %s51 = scalar_lea.vmem [#allocation7], 8
    %52 = vst [vmem:[%s51] sm:$0xff] %v50
    %v53 = vmul.f32 %v40, %v40
    %v54 = vmul.f32 %v41, %v41
    %v55 = vadd.f32 %v53, %v54
    %s56 = scalar_lea.vmem [#allocation7], 16
    %57 = vst [vmem:[%s56] sm:$0xff] %v55
    // Predicated region
    $region18: #{tpu_custom_call.1} parent=1 // pred_check
      _
    $region19: #{tpu_custom_call.1} parent=1 // pred_check_branch
      %59 = sbr.rel (0) target = $region21
    $region20: #{tpu_custom_call.1} parent=1 // pred_region
      %s61 = ssub.s32 384, 384
      %62 = vsyncadd [#allocation4], %s61
      %s63 = sshll.u32 [#allocation7], 4
      %s64 = int_to_ptr.vmem [resolvable:$true] %s63
      %69 = dma.vmem_to_hbm [thread:$0]  %s64, 384, %s2, [#allocation4], 128, 128, 8
    $region21: #{tpu_custom_call.1} parent=1 // pred_fallthru
      _
    // Predicated region
    $region22: #{tpu_custom_call.1} parent=1 // pred_check
      _
    $region23: #{tpu_custom_call.1} parent=1 // pred_check_branch
      %71 = sbr.rel (0) target = $region25
    $region24: #{tpu_custom_call.1} parent=1 // pred_region
      %72 = dma.done [#allocation4], 384
    $region25: #{tpu_custom_call.1} parent=1 // pred_fallthru
      _
    %73 = vsyncpa [#allocation3], 1
    %74 = vsyncpa [#allocation6], 1
    %75 = vsyncpa [#allocation4], 1

</llo_original>
